<compile_context>
chip_gen: v5e
topology: v5e:2x2
jax: 0.10.0
libtpu: 0.0.40
codegen_flags: <defaults>
</compile_context>

<pallas_src>
import functools

import jax
import jax.numpy as jnp
from jax.experimental import pallas as pl
from jax.experimental.pallas import tpu as pltpu

_LANE = 128


def _binarize_kernel(thr_ref, x_ref, o_ref):
    # thr_ref: (1,) threshold scalar in SMEM
    # x_ref / o_ref: (block_rows, lanes) VMEM tiles
    o_ref[...] = (x_ref[...] > thr_ref[0]).astype(o_ref.dtype)


def _round_up(x, m):
    return (x + m - 1) // m * m


def _sublane(dtype):
    """Sublane granularity: 8 rows for 32-bit, 16 for 16-bit, 32 for 8-bit."""
    return max(8, 32 // jnp.dtype(dtype).itemsize)


@functools.lru_cache(maxsize=None)
def _chip_config():
    """(block_bytes_target, vmem_limit_bytes, two_tensorcores) per generation."""
    try:
        kind = jax.devices()[0].device_kind.lower()
    except Exception:
        kind = ""
    if "v7" in kind:
        # ~3.2 TB/s HBM: 8 MiB blocks (resident ~4x = 32 MiB) + raised scoped-
        # VMEM limit; shard the single grid axis across the two TensorCores.
        return 8 << 20, 48 << 20, True
    if "v6" in kind:
        # 4 MiB blocks -> ~16 MiB resident, inside the 32 MiB scoped default.
        return 4 << 20, None, False
    # v5e (and anything unknown): 2 MiB blocks stay inside the 16 MiB default.
    return 2 << 20, None, False


@functools.lru_cache(maxsize=None)
def _pick_slab(total):
    """Pick an exact (rows, lanes) factorization of `total`.

    Returns (rows, lanes, exact).  exact=True -> rows*lanes == total and the
    kernel reads/writes the original (reshaped, copy-free) buffers directly.
    exact=False -> no acceptable factorization; caller uses the padded
    fallback (extra pad + slice copies; pathological/tiny sizes only).
    """
    if total % _LANE == 0:
        lanes = _LANE
        for w in (4096, 2048, 1024, 512, 256):
            if total % w == 0:
                lanes = w
                break
        return total // lanes, lanes, True

    # Unaligned: search for a divisor C (used as a full-extent last dim) whose
    # padded footprint (lanes rounded to 128, rows rounded to 8) wastes <25%.
    best = None
    limit = min(total, 1 << 14)
    for c in range(1, limit + 1):
        if total % c:
            continue
        r = total // c
        waste = (_round_up(c, _LANE) * _round_up(r, 8)) / total
        if waste <= 1.25 and (
            best is None or waste < best[2] or (waste == best[2] and c > best[1])
        ):
            best = (r, c, waste)
    if best is not None:
        return best[0], best[1], True
    return 0, 0, False


def _pick_block_rows(rows, lanes, sub, block_bytes, two_cores):
    lanes_pad = _round_up(lanes, _LANE)
    target = max(sub, ((block_bytes // 4) // lanes_pad) // sub * sub)
    if rows > target:
        block_rows = target
    elif rows >= 2 * sub:
        # Small input: split into two (nearly) equal sublane-rounded halves so
        # both v7x TensorCores get work (measured-neutral on single-TC chips).
        block_rows = min(rows, _round_up(pl.cdiv(rows, 2), sub))
    else:
        block_rows = rows  # block == full extent, always a legal block shape
    if two_cores and block_rows < rows:
        # Keep small block counts even so neither core idles on a tail block.
        n = pl.cdiv(rows, block_rows)
        if n % 2 == 1 and n <= 16:
            block_rows = max(sub, _round_up(pl.cdiv(rows, n + 1), sub))
    return block_rows


def binarize(x, threshold, out_dtype=jnp.float32):
    """out = (x > threshold).astype(out_dtype); matches torch Binarize.forward."""
    orig_shape = x.shape
    total = x.size
    if total == 0:
        return jnp.zeros(orig_shape, out_dtype)

    block_bytes, vmem_limit, two_cores = _chip_config()
    sub = max(_sublane(x.dtype), _sublane(out_dtype))

    x_flat = jnp.ravel(x)  # free reshape of a contiguous buffer
    rows, lanes, exact = _pick_slab(total)
    pad = 0
    if not exact:
        # Rare fallback (tiny or near-prime totals): pad to a lane multiple and
        # slice the result.  Costs two extra HBM passes but never triggers for
        # realistic feature-map shapes.
        pad = (-total) % _LANE
        x_flat = jnp.pad(x_flat, (0, pad))
        padded = total + pad
        lanes = _LANE
        for w in (4096, 2048, 1024, 512, 256):
            if padded % w == 0:
                lanes = w
                break
        rows = padded // lanes

    x2d = x_flat.reshape(rows, lanes)
    block_rows = _pick_block_rows(rows, lanes, sub, block_bytes, two_cores)
    grid = (pl.cdiv(rows, block_rows),)

    thr = jnp.asarray(threshold, dtype=jnp.float32).reshape((1,))
    in_bytes = total * jnp.dtype(x.dtype).itemsize
    out_bytes = total * jnp.dtype(out_dtype).itemsize
    dim_sem = (pltpu.CORE_PARALLEL,) if two_cores else ("parallel",)

    out2d = pl.pallas_call(
        _binarize_kernel,
        out_shape=jax.ShapeDtypeStruct((rows, lanes), out_dtype),
        grid=grid,
        in_specs=[
            pl.BlockSpec(memory_space=pltpu.MemorySpace.SMEM),  # threshold scalar
            pl.BlockSpec((block_rows, lanes), lambda i: (i, 0)),
        ],
        out_specs=pl.BlockSpec((block_rows, lanes), lambda i: (i, 0)),
        compiler_params=pltpu.CompilerParams(
            dimension_semantics=dim_sem,
            vmem_limit_bytes=vmem_limit,
        ),
        cost_estimate=pl.CostEstimate(
            flops=total, transcendentals=0, bytes_accessed=in_bytes + out_bytes
        ),
    )(thr, x2d)

    if pad:
        return out2d.reshape(-1)[:total].reshape(orig_shape)
    return out2d.reshape(orig_shape)


class BinarizeParams:
    """Mirrors nn.Parameter(torch.tensor(threshold)); forward = (x > thr).float()."""

    def __init__(self, threshold=0.5, out_dtype=jnp.float32):
        self.threshold = jnp.float32(threshold)
        self.out_dtype = out_dtype

    def __call__(self, x):
        return binarize(x, self.threshold, self.out_dtype)


if __name__ == "__main__":
    key = jax.random.PRNGKey(0)
    module = BinarizeParams(threshold=0.5)

    # NCHW input, like the PyTorch module would receive (128-aligned path).
    x = jax.random.uniform(key, (2, 4, 16, 16), dtype=jnp.float32)
    out = jax.block_until_ready(module(x))
    ref = (x > jnp.float32(0.5)).astype(jnp.float32)
    assert out.shape == x.shape and out.dtype == jnp.float32
    assert bool(jnp.all(out == ref))

    # Multi-block grid / balanced two-way split path.
    x_big = jax.random.uniform(jax.random.PRNGKey(1), (4, 4, 128, 128), dtype=jnp.float32)
    out_big = jax.block_until_ready(module(x_big))
    assert bool(jnp.all(out_big == (x_big > jnp.float32(0.5)).astype(jnp.float32)))

    # Non-128-aligned but factorable: zero-copy full-extent-lane path.
    x_odd = jax.random.uniform(jax.random.PRNGKey(2), (40, 200), dtype=jnp.float32)
    out_odd = jax.block_until_ready(module(x_odd))
    assert bool(jnp.all(out_odd == (x_odd > jnp.float32(0.5)).astype(jnp.float32)))

    # Pathological size (no good factorization): padded fallback path.
    x_tiny = jax.random.uniform(jax.random.PRNGKey(3), (3, 5, 7), dtype=jnp.float32)
    out_tiny = jax.block_until_ready(module(x_tiny))
    assert out_tiny.shape == x_tiny.shape
    assert bool(jnp.all(out_tiny == (x_tiny > jnp.float32(0.5)).astype(jnp.float32)))

    # bf16 input (dtype-aware sublane rounding), float32 mask output.
    x_bf16 = jax.random.uniform(jax.random.PRNGKey(4), (2, 4, 16, 16), dtype=jnp.bfloat16)
    out_bf16 = jax.block_until_ready(module(x_bf16))
    assert out_bf16.dtype == jnp.float32
    assert bool(jnp.all(out_bf16 == (x_bf16 > jnp.float32(0.5)).astype(jnp.float32)))

    print("KERNEL_OK")
</pallas_src>

<mosaic_0001>
module attributes {stable_mosaic.version = 11 : i64} {
  func.func @_binarize_kernel(%arg0: i32, %arg1: memref<1xf32, #tpu.memory_space<smem>>, %arg2: memref<1x2048xf32, #tpu.memory_space<vmem>>, %arg3: memref<1x2048xf32, #tpu.memory_space<vmem>>) attributes {dimension_semantics = [#tpu.dimension_semantics<parallel>], iteration_bounds = array<i64: 1>, scalar_prefetch = 0 : i64, scratch_operands = 0 : i64, tpu.core_type = #tpu.core_type<tc>, window_params = [{transform_indices = @transform_0, window_bounds = array<i64: 1>}, {transform_indices = @transform_1, window_bounds = array<i64: 1, 2048>}, {transform_indices = @transform_2, window_bounds = array<i64: 1, 2048>}]} {
    %c0 = arith.constant 0 : index
    %c0_0 = arith.constant 0 : index
    %0 = vector.load %arg2[%c0, %c0_0] : memref<1x2048xf32, #tpu.memory_space<vmem>>, vector<1x2048xf32>
    %c0_1 = arith.constant 0 : index
    %1 = memref.load %arg1[%c0_1] : memref<1xf32, #tpu.memory_space<smem>>
    %2 = vector.broadcast %1 : f32 to vector<1x2048xf32>
    %3 = arith.cmpf ogt, %0, %2 : vector<1x2048xf32>
    %4 = arith.extui %3 : vector<1x2048xi1> to vector<1x2048xi32>
    %5 = arith.sitofp %4 : vector<1x2048xi32> to vector<1x2048xf32>
    %c0_2 = arith.constant 0 : index
    %c0_3 = arith.constant 0 : index
    %6 = vector.load %arg3[%c0_2, %c0_3] : memref<1x2048xf32, #tpu.memory_space<vmem>>, vector<1x2048xf32>
    tpu.vector_store %arg3[%c0_2, %c0_3], %5 {strides = array<i32>} : memref<1x2048xf32, #tpu.memory_space<vmem>>, vector<1x2048xf32>,
    return
  }
  func.func @transform_0(%arg0: i32) -> i32 {
    %c0_i32 = arith.constant 0 : i32
    %c0_i32_0 = arith.constant 0 : i32
    return %c0_i32 : i32
  }
  func.func @transform_1(%arg0: i32) -> (i32, i32) {
    %c0_i32 = arith.constant 0 : i32
    %c0_i32_0 = arith.constant 0 : i32
    return %arg0, %c0_i32 : i32, i32
  }
  func.func @transform_2(%arg0: i32) -> (i32, i32) {
    %c0_i32 = arith.constant 0 : i32
    %c0_i32_0 = arith.constant 0 : i32
    return %arg0, %c0_i32 : i32, i32
  }
}

</mosaic_0001>

<llo_original>
// kernel: tpu_custom_call.1
$region0: #{tpu_custom_call.1}
  #allocation0 [shape = 'u32[]', space=smem, size = 0x4, offset = 0x4, fixed_abs, tag = 'smem constant byte address 0x4 - core index']
  #allocation1 [shape = 'u32[72,128]{1,0:T(1,128)}', space=vmem, size = 0x9000, scoped, tag = 'internal scratch']
  #allocation2 [shape = 'f32[1]{0:T(128)S(6)}', space=smem, size = 0x200, scoped, tag = 'scoped memory for tpu_custom_call.1']
  %s0 = inlined_call_operand.<no memory space> [shape: f32[1], index: 0, kind: input, shape index: {}]
  %s1 = inlined_call_operand.hbm [shape: f32[1,2048], index: 1, kind: input, shape index: {}]
  %s2 = inlined_call_operand.hbm [shape: f32[1,2048], index: 2, kind: output, shape index: {}]
  %s3 = sld [smem:[#allocation0]]
  $region22: #{tpu_custom_call.1} parent=0
    _
  %s5 = ssub.s32 1, %s3
  %s6 = scalar_select 0, %s5, %s3
  %7 = sst [smem:[#allocation2]] %s0
  $region1: #{tpu_custom_call.1} parent=0
    #allocation3 [shape = 'u8[8192]{0}', space=vmem, size = 0x2000, scoped, tag = 'input window, operand 1, single buffered']
    #allocation4 [shape = 's32[1]{0}', space=sflag, size = 0x4, scoped, tag = 'scoped memory for tpu_custom_call.1']
    #allocation5 [shape = 's32[1]{0}', space=sflag, size = 0x4, scoped, tag = 'scoped memory for tpu_custom_call.1']
    #allocation6 [shape = 'u8[8192]{0}', space=vmem, size = 0x2000, scoped, tag = 'output window, operand 0, single buffered']
    %8 = vsyncpa [#allocation4], 0
    %9 = vsyncpa [#allocation5], 0
    // Predicated region
    $region2: #{tpu_custom_call.1} parent=1 // pred_check
      _
    $region3: #{tpu_custom_call.1} parent=1 // pred_check_branch
      %11 = sbr.rel (0) target = $region5
    $region4: #{tpu_custom_call.1} parent=1 // pred_region
      _
    $region5: #{tpu_custom_call.1} parent=1 // pred_fallthru
      _
    // Predicated region
    $region6: #{tpu_custom_call.1} parent=1 // pred_check
      _
    $region7: #{tpu_custom_call.1} parent=1 // pred_check_branch
      %13 = sbr.rel (0) target = $region9
    $region8: #{tpu_custom_call.1} parent=1 // pred_region
      %15 = vsyncadd [#allocation4], 0
      %s17 = sshll.u32 %s1, 4
      %s18 = int_to_ptr.hbm [resolvable:$true] %s17
      %s19 = sshll.u32 [#allocation3], 4
      %s20 = int_to_ptr.vmem [resolvable:$true] %s19
      %22 = dma.hbm_to_vmem [thread:$0]  %s18, 256, %s20, [#allocation4]
    $region9: #{tpu_custom_call.1} parent=1 // pred_fallthru
      _
    // Predicated region
    $region10: #{tpu_custom_call.1} parent=1 // pred_check
      _
    $region11: #{tpu_custom_call.1} parent=1 // pred_check_branch
      %24 = sbr.rel (0) target = $region13
    $region12: #{tpu_custom_call.1} parent=1 // pred_region
      %26 = dma.done [#allocation4], 256
    $region13: #{tpu_custom_call.1} parent=1 // pred_fallthru
      _
    %v27 = vld [vmem:[#allocation3] sm:$0xff]
    %v28 = vld [vmem:[#allocation3 + $0x8] sm:$0xff]
    %s29 = sld [smem:[#allocation2]]
    %v30 = vstv %s29
    %vm31 = vcmp.gt.f32.partialorder %v27, %v30
    %vm32 = vcmp.gt.f32.partialorder %v28, %v30
    %v33 = vsel %vm31, 1, 0
    %v34 = vsel %vm32, 1, 0
    %v35 = vcvt.s32.f32 %v33
    %v36 = vcvt.s32.f32 %v34
    %37 = vst [vmem:[#allocation6] sm:$0xff] %v35
    %38 = vst [vmem:[#allocation6 + $0x8] sm:$0xff] %v36
    // Predicated region
    $region14: #{tpu_custom_call.1} parent=1 // pred_check
      _
    $region15: #{tpu_custom_call.1} parent=1 // pred_check_branch
      %40 = sbr.rel (0) target = $region17
    $region16: #{tpu_custom_call.1} parent=1 // pred_region
      %42 = vsyncadd [#allocation5], 0
      %s44 = sshll.u32 [#allocation6], 4
      %s45 = int_to_ptr.vmem [resolvable:$true] %s44
      %s46 = sshll.u32 %s2, 4
      %s47 = int_to_ptr.hbm [resolvable:$true] %s46
      %49 = dma.vmem_to_hbm [thread:$0]  %s45, 256, %s47, [#allocation5]
    $region17: #{tpu_custom_call.1} parent=1 // pred_fallthru
      _
    // Predicated region
    $region18: #{tpu_custom_call.1} parent=1 // pred_check
      _
    $region19: #{tpu_custom_call.1} parent=1 // pred_check_branch
      %51 = sbr.rel (0) target = $region21
    $region20: #{tpu_custom_call.1} parent=1 // pred_region
      %53 = dma.done [#allocation5], 256
    $region21: #{tpu_custom_call.1} parent=1 // pred_fallthru
      _
    %54 = vsyncpa [#allocation4], 1
    %55 = vsyncpa [#allocation5], 1

</llo_original>
